<compile_context>
chip_gen: v7x
topology: tpu7x:2x2x1
jax: 0.10.0
libtpu: 0.0.40
codegen_flags: <defaults>
</compile_context>

<pallas_src>
import functools

import jax
import jax.numpy as jnp
from jax import lax
from jax.experimental import pallas as pl
from jax.experimental.pallas import tpu as pltpu


_I32_MIN = -2147483648
_I32_MAX = 2147483647
_BISECT_ITERS = 32


# ----------------------------------------------------------------------------
# In-kernel order-statistic selection (value-space bisection)
# ----------------------------------------------------------------------------
def _order_stats(x, isn, ks):
    """k-th smallest value (0-based, NaNs sorted last) per lane column of x.

    x:   [S, Ct] float32
    isn: [S, Ct] bool (isnan mask)
    ks:  list of [1, Ct] int32 order-statistic indices
    Returns a list of [1, Ct] float32 values (exact bit patterns).
    """
    u = lax.bitcast_convert_type(x, jnp.int32)
    # Monotone total order on float32 bit patterns (negatives get all non-sign
    # bits flipped); NaNs are forced to INT32_MAX so they sort to the end.
    key = jnp.where(u < 0, u ^ _I32_MAX, u)
    key = jnp.where(isn, _I32_MAX, key)

    los = tuple(jnp.full_like(k, _I32_MIN) for k in ks)
    his = tuple(jnp.full_like(k, _I32_MAX) for k in ks)

    def body(_, carry):
        los, his = carry
        new_los, new_his = [], []
        for k, lo, hi in zip(ks, los, his):
            # Overflow-safe floor((lo + hi) / 2) in int32.
            mid = (lo >> 1) + (hi >> 1) + (lo & hi & 1)
            cnt = jnp.sum((key <= mid).astype(jnp.int32), axis=0, keepdims=True)
            go_hi = cnt > k                      # cnt >= k + 1
            new_los.append(jnp.where(go_hi, lo, mid + 1))
            new_his.append(jnp.where(go_hi, mid, hi))
        return tuple(new_los), tuple(new_his)

    _, his = lax.fori_loop(0, _BISECT_ITERS, body, (los, his))

    vals = []
    for hi in his:
        ub = jnp.where(hi < 0, hi ^ _I32_MAX, hi)       # invert the encoding
        vals.append(lax.bitcast_convert_type(ub, jnp.float32))
    return vals


# ----------------------------------------------------------------------------
# Kernels (operate on 2-D [S, Ct] tiles; batch dim squeezed by BlockSpec)
# ----------------------------------------------------------------------------
def _robust_kernel(eps_ref, x_ref, med_ref, iqr_ref, out_ref,
                   *, q_low, q_high, clamp):
    eps = eps_ref[0]
    x = x_ref[...].astype(jnp.float32)               # [S, Ct]
    nan = jnp.float32(jnp.nan)

    isn = jnp.isnan(x)
    n = jnp.sum(jnp.logical_not(isn).astype(jnp.int32), axis=0, keepdims=True)
    nf = n.astype(jnp.float32)

    # torch.nanmedian -> lower of the two middle order statistics.
    k_med = (n - 1) >> 1
    # torch.nanquantile -> linear interpolation between floor/ceil of q*(n-1).
    pos1 = jnp.float32(q_low) * (nf - 1.0)
    pos3 = jnp.float32(q_high) * (nf - 1.0)
    lo1 = jnp.floor(pos1)
    lo3 = jnp.floor(pos3)

    med, v1l, v1h, v3l, v3h = _order_stats(
        x, isn,
        [k_med,
         lo1.astype(jnp.int32), jnp.ceil(pos1).astype(jnp.int32),
         lo3.astype(jnp.int32), jnp.ceil(pos3).astype(jnp.int32)])

    q1 = v1l + (pos1 - lo1) * (v1h - v1l)
    q3 = v3l + (pos3 - lo3) * (v3h - v3l)

    empty = n == 0                                    # all-NaN column
    med = jnp.where(empty, nan, med)
    q1 = jnp.where(empty, nan, q1)
    q3 = jnp.where(empty, nan, q3)

    iqr = jnp.maximum(q3 - q1, eps)                   # NaN propagates (torch.clamp)
    med_ref[...] = med
    iqr_ref[...] = iqr

    inv_iqr = 1.0 / iqr                               # divide once per channel ...
    scaled = (x - med) * inv_iqr                      # ... multiply on the tile
    scaled = jnp.where(jnp.isnan(scaled), 0.0, scaled)
    if clamp is not None:
        scaled = jnp.clip(scaled, -clamp, clamp)
    out_ref[...] = scaled.astype(out_ref.dtype)


def _minmax_kernel(eps_ref, x_ref, max_ref, min_ref, out_ref):
    eps = eps_ref[0]
    x = x_ref[...].astype(jnp.float32)                # [S, Ct]

    mx = jnp.max(x, axis=0, keepdims=True)            # NaN propagates, like torch
    mn = jnp.min(x, axis=0, keepdims=True)
    rng = jnp.maximum(mx - mn, eps)

    max_ref[...] = mx
    min_ref[...] = mn

    inv = 1.0 / rng
    scaled = (x - mn) * inv
    scaled = jnp.where(jnp.isnan(scaled), 0.0, scaled)
    out_ref[...] = scaled.astype(out_ref.dtype)


# ----------------------------------------------------------------------------
# Wrapper (tiling / specs only)
# ----------------------------------------------------------------------------
def _vmem_capacity_bytes():
    try:
        info = pltpu.get_tpu_info()
        cap = getattr(info, "vmem_capacity_bytes", None)
        if cap:
            return int(cap)
    except Exception:
        pass
    return 64 * 1024 * 1024          # conservative default (v7x per-core VMEM)


def _channel_tile(C, S, n_live, budget_bytes, batch):
    """Largest channel tile (multiple of 128 dividing C) whose ~n_live live
    f32 [S, Ct] buffers fit the budget, preferring >= 2 total grid programs."""
    if C % 128 != 0:
        # Ragged channel count: one full-width tile (masked lane stores).
        # TODO(synk): pad ragged C to a multiple of 128 when S*C is very large.
        return C
    cands = [t for t in (2048, 1024, 512, 256, 128) if t <= C and C % t == 0]
    if not cands:
        return C
    fitting = [t for t in cands if n_live * 4 * S * t <= budget_bytes]
    if not fitting:
        return cands[-1]
    both_cores = [t for t in fitting if batch * (C // t) >= 2]
    return both_cores[0] if both_cores else fitting[0]


def _run_scaler(kernel, inputs, epsilon, *, n_live):
    inputs = jnp.asarray(inputs)                      # native dtype straight in
    B, S, C = inputs.shape
    eps = jnp.asarray(epsilon, dtype=jnp.float32).reshape(1)

    cap = _vmem_capacity_bytes()
    vmem_limit = min(cap * 3 // 4, 96 * 1024 * 1024)  # generation-aware headroom
    ct = _channel_tile(C, S, n_live, vmem_limit // 2, B)
    grid = (B, C // ct)

    smem_spec = pl.BlockSpec(memory_space=pltpu.MemorySpace.SMEM)
    in_specs = [smem_spec,
                pl.BlockSpec((None, S, ct), lambda b, c: (b, 0, c))]
    out_specs = (
        pl.BlockSpec((None, 1, ct), lambda b, c: (b, 0, c)),
        pl.BlockSpec((None, 1, ct), lambda b, c: (b, 0, c)),
        pl.BlockSpec((None, S, ct), lambda b, c: (b, 0, c)),
    )
    out_shape = (
        jax.ShapeDtypeStruct((B, 1, C), jnp.float32),
        jax.ShapeDtypeStruct((B, 1, C), jnp.float32),
        jax.ShapeDtypeStruct((B, S, C), jnp.float32),
    )
    # TODO(synk): block several batches per grid step when S*C per batch is tiny.
    p0, p1, scaled = pl.pallas_call(
        kernel,
        out_shape=out_shape,
        grid=grid,
        in_specs=in_specs,
        out_specs=out_specs,
        compiler_params=pltpu.CompilerParams(
            dimension_semantics=("parallel", "parallel"),
            vmem_limit_bytes=int(vmem_limit),
        ),
    )(eps, inputs)
    return (p0, p1), scaled


def custom_scaler_robust_multivariate(inputs, epsilon, q_low=0.25, q_high=0.75, clamp=None):
    kernel = functools.partial(
        _robust_kernel, q_low=float(q_low), q_high=float(q_high), clamp=clamp)
    return _run_scaler(kernel, inputs, epsilon, n_live=8)


def min_max_scaler_multivariate(inputs, epsilon):
    return _run_scaler(_minmax_kernel, inputs, epsilon, n_live=5)


class CustomScalingMultivariate:
    """JAX/Pallas port of the PyTorch CustomScalingMultivariate module."""

    def __init__(self, name, clamp=None):
        self.name = name
        self.clamp = clamp
        if name == "custom_robust":
            self.scaler = lambda x, eps: custom_scaler_robust_multivariate(x, eps, clamp=clamp)
        elif name == "min_max":
            self.scaler = min_max_scaler_multivariate
        else:
            raise ValueError(f"Unknown scaler name: {name}")

    def __call__(self, values, epsilon):
        return self.scaler(values, epsilon)


# ----------------------------------------------------------------------------
# Pure-JAX references (NaN-free inputs) for correctness checks
# ----------------------------------------------------------------------------
def _robust_ref(x, eps, q_low=0.25, q_high=0.75, clamp=None):
    B, S, C = x.shape
    xs = jnp.sort(x, axis=1)
    med = xs[:, (S - 1) // 2, :]                      # torch lower-middle median
    q1 = jnp.quantile(x, q_low, axis=1)
    q3 = jnp.quantile(x, q_high, axis=1)
    iqr = jnp.maximum(q3 - q1, eps)
    scaled = (x - med[:, None, :]) / iqr[:, None, :]
    if clamp is not None:
        scaled = jnp.clip(scaled, -clamp, clamp)
    return med, iqr, scaled


def _minmax_ref(x, eps):
    mx = jnp.max(x, axis=1)
    mn = jnp.min(x, axis=1)
    rng = jnp.maximum(mx - mn, eps)
    scaled = (x - mn[:, None, :]) / rng[:, None, :]
    return mx, mn, scaled


def _check(scaler_name, x, eps, clamp=None):
    scaler = CustomScalingMultivariate(scaler_name, clamp=clamp)
    (p0, p1), scaled = scaler(x, eps)
    jax.block_until_ready(scaled)
    if scaler_name == "custom_robust":
        r0, r1, rs = _robust_ref(x, eps, clamp=clamp)
    else:
        r0, r1, rs = _minmax_ref(x, eps)
    assert jnp.allclose(p0[:, 0, :], r0, atol=1e-5, rtol=1e-5)
    assert jnp.allclose(p1[:, 0, :], r1, atol=1e-5, rtol=1e-5)
    assert jnp.allclose(scaled, rs, atol=1e-5, rtol=1e-5)


if __name__ == "__main__":
    eps = 1e-6
    key = jax.random.PRNGKey(0)
    k0, k1 = jax.random.split(key)

    # --- small ragged C (< 128): single full-width tile path ---
    B, S, C = 2, 8, 4
    x = jax.random.normal(k0, (B, S, C), dtype=jnp.float32) * 3.0 + 1.5
    _check("custom_robust", x, eps)
    _check("custom_robust", x, eps, clamp=1.0)
    _check("min_max", x, eps)

    # --- C multiple of 128: channel-tiled path ---
    B2, S2, C2 = 2, 16, 128
    x_big = jax.random.normal(k1, (B2, S2, C2), dtype=jnp.float32) * 2.0 - 0.5
    _check("custom_robust", x_big, eps)
    _check("min_max", x_big, eps)

    # --- NaN smoke test: robust path must zero NaN positions, no NaN in output ---
    x_nan = x.at[0, 1, 2].set(jnp.nan).at[1, :, 0].set(jnp.nan)
    robust = CustomScalingMultivariate("custom_robust", clamp=None)
    (_, _), x_rn = robust(x_nan, eps)
    jax.block_until_ready(x_rn)
    nan_mask = jnp.isnan(x_nan)
    assert bool(jnp.all(jnp.where(nan_mask, x_rn == 0.0, True)))
    assert not bool(jnp.any(jnp.isnan(x_rn)))

    print("KERNEL_OK")
</pallas_src>

<mosaic_0001>
module attributes {stable_mosaic.version = 11 : i64} {
  func.func @_robust_kernel(%arg0: i32, %arg1: i32, %arg2: memref<1xf32, #tpu.memory_space<smem>>, %arg3: memref<1x8x4xf32, #tpu.memory_space<vmem>>, %arg4: memref<1x1x4xf32, #tpu.memory_space<vmem>>, %arg5: memref<1x1x4xf32, #tpu.memory_space<vmem>>, %arg6: memref<1x8x4xf32, #tpu.memory_space<vmem>>) attributes {dimension_semantics = [#tpu.dimension_semantics<parallel>, #tpu.dimension_semantics<parallel>], iteration_bounds = array<i64: 2, 1>, scalar_prefetch = 0 : i64, scratch_operands = 0 : i64, tpu.core_type = #tpu.core_type<tc>, window_params = [{transform_indices = @transform_0, window_bounds = array<i64: 1>}, {transform_indices = @transform_1, window_bounds = array<i64: 1, 8, 4>}, {transform_indices = @transform_2, window_bounds = array<i64: 1, 1, 4>}, {transform_indices = @transform_3, window_bounds = array<i64: 1, 1, 4>}, {transform_indices = @transform_4, window_bounds = array<i64: 1, 8, 4>}]} {
    %c0 = arith.constant 0 : index
    %0 = memref.load %arg2[%c0] : memref<1xf32, #tpu.memory_space<smem>>
    %c0_0 = arith.constant 0 : index
    %c0_1 = arith.constant 0 : index
    %c0_2 = arith.constant 0 : index
    %1 = vector.load %arg3[%c0_0, %c0_1, %c0_2] : memref<1x8x4xf32, #tpu.memory_space<vmem>>, vector<1x8x4xf32>
    %2 = vector.shape_cast %1 : vector<1x8x4xf32> to vector<8x4xf32>
    %3 = arith.cmpf one, %2, %2 : vector<8x4xf32>
    %cst = arith.constant dense<true> : vector<8x4xi1>
    %4 = arith.xori %3, %cst : vector<8x4xi1>
    %5 = arith.extui %4 : vector<8x4xi1> to vector<8x4xi32>
    %cst_3 = arith.constant dense<0> : vector<4xi32>
    %6 = vector.multi_reduction <add>, %5, %cst_3 [0] : vector<8x4xi32> to vector<4xi32>
    %7 = vector.shape_cast %6 : vector<4xi32> to vector<1x4xi32>
    %8 = arith.sitofp %7 : vector<1x4xi32> to vector<1x4xf32>
    %c1_i32 = arith.constant 1 : i32
    %9 = vector.broadcast %c1_i32 : i32 to vector<1x4xi32>
    %10 = arith.subi %7, %9 : vector<1x4xi32>
    %c1_i32_4 = arith.constant 1 : i32
    %11 = vector.broadcast %c1_i32_4 : i32 to vector<1x4xi32>
    %12 = arith.shrsi %10, %11 : vector<1x4xi32>
    %cst_5 = arith.constant 1.000000e+00 : f32
    %13 = vector.broadcast %cst_5 : f32 to vector<1x4xf32>
    %14 = arith.subf %8, %13 : vector<1x4xf32>
    %cst_6 = arith.constant 2.500000e-01 : f32
    %15 = vector.broadcast %cst_6 : f32 to vector<1x4xf32>
    %16 = arith.mulf %15, %14 : vector<1x4xf32>
    %cst_7 = arith.constant 1.000000e+00 : f32
    %17 = vector.broadcast %cst_7 : f32 to vector<1x4xf32>
    %18 = arith.subf %8, %17 : vector<1x4xf32>
    %cst_8 = arith.constant 7.500000e-01 : f32
    %19 = vector.broadcast %cst_8 : f32 to vector<1x4xf32>
    %20 = arith.mulf %19, %18 : vector<1x4xf32>
    %21 = math.floor %16 : vector<1x4xf32>
    %22 = math.floor %20 : vector<1x4xf32>
    %23 = arith.fptosi %21 : vector<1x4xf32> to vector<1x4xi32>
    %24 = math.ceil %16 : vector<1x4xf32>
    %25 = arith.fptosi %24 : vector<1x4xf32> to vector<1x4xi32>
    %26 = arith.fptosi %22 : vector<1x4xf32> to vector<1x4xi32>
    %27 = math.ceil %20 : vector<1x4xf32>
    %28 = arith.fptosi %27 : vector<1x4xf32> to vector<1x4xi32>
    %29 = tpu.bitcast %2 : vector<8x4xf32> -> vector<8x4xi32>
    %c0_i32 = arith.constant 0 : i32
    %30 = vector.broadcast %c0_i32 : i32 to vector<8x4xi32>
    %31 = arith.cmpi slt, %29, %30 : vector<8x4xi32>
    %c2147483647_i32 = arith.constant 2147483647 : i32
    %32 = vector.broadcast %c2147483647_i32 : i32 to vector<8x4xi32>
    %33 = arith.xori %29, %32 : vector<8x4xi32>
    %34 = arith.select %31, %33, %29 : vector<8x4xi1>, vector<8x4xi32>
    %c2147483647_i32_9 = arith.constant 2147483647 : i32
    %35 = vector.broadcast %c2147483647_i32_9 : i32 to vector<8x4xi32>
    %36 = arith.select %3, %35, %34 : vector<8x4xi1>, vector<8x4xi32>
    %c-2147483648_i32 = arith.constant -2147483648 : i32
    %37 = vector.broadcast %c-2147483648_i32 : i32 to vector<1x4xi32>
    %c-2147483648_i32_10 = arith.constant -2147483648 : i32
    %38 = vector.broadcast %c-2147483648_i32_10 : i32 to vector<1x4xi32>
    %c-2147483648_i32_11 = arith.constant -2147483648 : i32
    %39 = vector.broadcast %c-2147483648_i32_11 : i32 to vector<1x4xi32>
    %c-2147483648_i32_12 = arith.constant -2147483648 : i32
    %40 = vector.broadcast %c-2147483648_i32_12 : i32 to vector<1x4xi32>
    %c-2147483648_i32_13 = arith.constant -2147483648 : i32
    %41 = vector.broadcast %c-2147483648_i32_13 : i32 to vector<1x4xi32>
    %c2147483647_i32_14 = arith.constant 2147483647 : i32
    %42 = vector.broadcast %c2147483647_i32_14 : i32 to vector<1x4xi32>
    %c2147483647_i32_15 = arith.constant 2147483647 : i32
    %43 = vector.broadcast %c2147483647_i32_15 : i32 to vector<1x4xi32>
    %c2147483647_i32_16 = arith.constant 2147483647 : i32
    %44 = vector.broadcast %c2147483647_i32_16 : i32 to vector<1x4xi32>
    %c2147483647_i32_17 = arith.constant 2147483647 : i32
    %45 = vector.broadcast %c2147483647_i32_17 : i32 to vector<1x4xi32>
    %c2147483647_i32_18 = arith.constant 2147483647 : i32
    %46 = vector.broadcast %c2147483647_i32_18 : i32 to vector<1x4xi32>
    %c0_i32_19 = arith.constant 0 : i32
    %c32_i32 = arith.constant 32 : i32
    %47 = arith.addi %c0_i32_19, %c32_i32 : i32
    %c1_i32_20 = arith.constant 1 : i32
    %48:10 = scf.for %arg7 = %c0_i32_19 to %47 step %c1_i32_20 iter_args(%arg8 = %37, %arg9 = %38, %arg10 = %39, %arg11 = %40, %arg12 = %41, %arg13 = %42, %arg14 = %43, %arg15 = %44, %arg16 = %45, %arg17 = %46) -> (vector<1x4xi32>, vector<1x4xi32>, vector<1x4xi32>, vector<1x4xi32>, vector<1x4xi32>, vector<1x4xi32>, vector<1x4xi32>, vector<1x4xi32>, vector<1x4xi32>, vector<1x4xi32>)  : i32 {
      %c1_i32_46 = arith.constant 1 : i32
      %116 = vector.broadcast %c1_i32_46 : i32 to vector<1x4xi32>
      %117 = arith.shrsi %arg8, %116 : vector<1x4xi32>
      %c1_i32_47 = arith.constant 1 : i32
      %118 = vector.broadcast %c1_i32_47 : i32 to vector<1x4xi32>
      %119 = arith.shrsi %arg13, %118 : vector<1x4xi32>
      %120 = arith.addi %117, %119 : vector<1x4xi32>
      %121 = arith.andi %arg8, %arg13 : vector<1x4xi32>
      %c1_i32_48 = arith.constant 1 : i32
      %122 = vector.broadcast %c1_i32_48 : i32 to vector<1x4xi32>
      %123 = arith.andi %121, %122 : vector<1x4xi32>
      %124 = arith.addi %120, %123 : vector<1x4xi32>
      %125 = vector.broadcast %124 : vector<1x4xi32> to vector<8x4xi32>
      %126 = arith.cmpi sle, %36, %125 : vector<8x4xi32>
      %127 = arith.extui %126 : vector<8x4xi1> to vector<8x4xi32>
      %cst_49 = arith.constant dense<0> : vector<4xi32>
      %128 = vector.multi_reduction <add>, %127, %cst_49 [0] : vector<8x4xi32> to vector<4xi32>
      %129 = vector.shape_cast %128 : vector<4xi32> to vector<1x4xi32>
      %130 = arith.cmpi sgt, %129, %12 : vector<1x4xi32>
      %c1_i32_50 = arith.constant 1 : i32
      %131 = vector.broadcast %c1_i32_50 : i32 to vector<1x4xi32>
      %132 = arith.addi %124, %131 : vector<1x4xi32>
      %133 = arith.select %130, %arg8, %132 : vector<1x4xi1>, vector<1x4xi32>
      %134 = arith.select %130, %124, %arg13 : vector<1x4xi1>, vector<1x4xi32>
      %c1_i32_51 = arith.constant 1 : i32
      %135 = vector.broadcast %c1_i32_51 : i32 to vector<1x4xi32>
      %136 = arith.shrsi %arg9, %135 : vector<1x4xi32>
      %c1_i32_52 = arith.constant 1 : i32
      %137 = vector.broadcast %c1_i32_52 : i32 to vector<1x4xi32>
      %138 = arith.shrsi %arg14, %137 : vector<1x4xi32>
      %139 = arith.addi %136, %138 : vector<1x4xi32>
      %140 = arith.andi %arg9, %arg14 : vector<1x4xi32>
      %c1_i32_53 = arith.constant 1 : i32
      %141 = vector.broadcast %c1_i32_53 : i32 to vector<1x4xi32>
      %142 = arith.andi %140, %141 : vector<1x4xi32>
      %143 = arith.addi %139, %142 : vector<1x4xi32>
      %144 = vector.broadcast %143 : vector<1x4xi32> to vector<8x4xi32>
      %145 = arith.cmpi sle, %36, %144 : vector<8x4xi32>
      %146 = arith.extui %145 : vector<8x4xi1> to vector<8x4xi32>
      %cst_54 = arith.constant dense<0> : vector<4xi32>
      %147 = vector.multi_reduction <add>, %146, %cst_54 [0] : vector<8x4xi32> to vector<4xi32>
      %148 = vector.shape_cast %147 : vector<4xi32> to vector<1x4xi32>
      %149 = arith.cmpi sgt, %148, %23 : vector<1x4xi32>
      %c1_i32_55 = arith.constant 1 : i32
      %150 = vector.broadcast %c1_i32_55 : i32 to vector<1x4xi32>
      %151 = arith.addi %143, %150 : vector<1x4xi32>
      %152 = arith.select %149, %arg9, %151 : vector<1x4xi1>, vector<1x4xi32>
      %153 = arith.select %149, %143, %arg14 : vector<1x4xi1>, vector<1x4xi32>
      %c1_i32_56 = arith.constant 1 : i32
      %154 = vector.broadcast %c1_i32_56 : i32 to vector<1x4xi32>
      %155 = arith.shrsi %arg10, %154 : vector<1x4xi32>
      %c1_i32_57 = arith.constant 1 : i32
      %156 = vector.broadcast %c1_i32_57 : i32 to vector<1x4xi32>
      %157 = arith.shrsi %arg15, %156 : vector<1x4xi32>
      %158 = arith.addi %155, %157 : vector<1x4xi32>
      %159 = arith.andi %arg10, %arg15 : vector<1x4xi32>
      %c1_i32_58 = arith.constant 1 : i32
      %160 = vector.broadcast %c1_i32_58 : i32 to vector<1x4xi32>
      %161 = arith.andi %159, %160 : vector<1x4xi32>
      %162 = arith.addi %158, %161 : vector<1x4xi32>
      %163 = vector.broadcast %162 : vector<1x4xi32> to vector<8x4xi32>
      %164 = arith.cmpi sle, %36, %163 : vector<8x4xi32>
      %165 = arith.extui %164 : vector<8x4xi1> to vector<8x4xi32>
      %cst_59 = arith.constant dense<0> : vector<4xi32>
      %166 = vector.multi_reduction <add>, %165, %cst_59 [0] : vector<8x4xi32> to vector<4xi32>
      %167 = vector.shape_cast %166 : vector<4xi32> to vector<1x4xi32>
      %168 = arith.cmpi sgt, %167, %25 : vector<1x4xi32>
      %c1_i32_60 = arith.constant 1 : i32
      %169 = vector.broadcast %c1_i32_60 : i32 to vector<1x4xi32>
      %170 = arith.addi %162, %169 : vector<1x4xi32>
      %171 = arith.select %168, %arg10, %170 : vector<1x4xi1>, vector<1x4xi32>
      %172 = arith.select %168, %162, %arg15 : vector<1x4xi1>, vector<1x4xi32>
      %c1_i32_61 = arith.constant 1 : i32
      %173 = vector.broadcast %c1_i32_61 : i32 to vector<1x4xi32>
      %174 = arith.shrsi %arg11, %173 : vector<1x4xi32>
      %c1_i32_62 = arith.constant 1 : i32
      %175 = vector.broadcast %c1_i32_62 : i32 to vector<1x4xi32>
      %176 = arith.shrsi %arg16, %175 : vector<1x4xi32>
      %177 = arith.addi %174, %176 : vector<1x4xi32>
      %178 = arith.andi %arg11, %arg16 : vector<1x4xi32>
      %c1_i32_63 = arith.constant 1 : i32
      %179 = vector.broadcast %c1_i32_63 : i32 to vector<1x4xi32>
      %180 = arith.andi %178, %179 : vector<1x4xi32>
      %181 = arith.addi %177, %180 : vector<1x4xi32>
      %182 = vector.broadcast %181 : vector<1x4xi32> to vector<8x4xi32>
      %183 = arith.cmpi sle, %36, %182 : vector<8x4xi32>
      %184 = arith.extui %183 : vector<8x4xi1> to vector<8x4xi32>
      %cst_64 = arith.constant dense<0> : vector<4xi32>
      %185 = vector.multi_reduction <add>, %184, %cst_64 [0] : vector<8x4xi32> to vector<4xi32>
      %186 = vector.shape_cast %185 : vector<4xi32> to vector<1x4xi32>
      %187 = arith.cmpi sgt, %186, %26 : vector<1x4xi32>
      %c1_i32_65 = arith.constant 1 : i32
      %188 = vector.broadcast %c1_i32_65 : i32 to vector<1x4xi32>
      %189 = arith.addi %181, %188 : vector<1x4xi32>
      %190 = arith.select %187, %arg11, %189 : vector<1x4xi1>, vector<1x4xi32>
      %191 = arith.select %187, %181, %arg16 : vector<1x4xi1>, vector<1x4xi32>
      %c1_i32_66 = arith.constant 1 : i32
      %192 = vector.broadcast %c1_i32_66 : i32 to vector<1x4xi32>
      %193 = arith.shrsi %arg12, %192 : vector<1x4xi32>
      %c1_i32_67 = arith.constant 1 : i32
      %194 = vector.broadcast %c1_i32_67 : i32 to vector<1x4xi32>
      %195 = arith.shrsi %arg17, %194 : vector<1x4xi32>
      %196 = arith.addi %193, %195 : vector<1x4xi32>
      %197 = arith.andi %arg12, %arg17 : vector<1x4xi32>
      %c1_i32_68 = arith.constant 1 : i32
      %198 = vector.broadcast %c1_i32_68 : i32 to vector<1x4xi32>
      %199 = arith.andi %197, %198 : vector<1x4xi32>
      %200 = arith.addi %196, %199 : vector<1x4xi32>
      %201 = vector.broadcast %200 : vector<1x4xi32> to vector<8x4xi32>
      %202 = arith.cmpi sle, %36, %201 : vector<8x4xi32>
      %203 = arith.extui %202 : vector<8x4xi1> to vector<8x4xi32>
      %cst_69 = arith.constant dense<0> : vector<4xi32>
      %204 = vector.multi_reduction <add>, %203, %cst_69 [0] : vector<8x4xi32> to vector<4xi32>
      %205 = vector.shape_cast %204 : vector<4xi32> to vector<1x4xi32>
      %206 = arith.cmpi sgt, %205, %28 : vector<1x4xi32>
      %c1_i32_70 = arith.constant 1 : i32
      %207 = vector.broadcast %c1_i32_70 : i32 to vector<1x4xi32>
      %208 = arith.addi %200, %207 : vector<1x4xi32>
      %209 = arith.select %206, %arg12, %208 : vector<1x4xi1>, vector<1x4xi32>
      %210 = arith.select %206, %200, %arg17 : vector<1x4xi1>, vector<1x4xi32>
      scf.yield %133, %152, %171, %190, %209, %134, %153, %172, %191, %210 : vector<1x4xi32>, vector<1x4xi32>, vector<1x4xi32>, vector<1x4xi32>, vector<1x4xi32>, vector<1x4xi32>, vector<1x4xi32>, vector<1x4xi32>, vector<1x4xi32>, vector<1x4xi32>
    }
    %c0_i32_21 = arith.constant 0 : i32
    %49 = vector.broadcast %c0_i32_21 : i32 to vector<1x4xi32>
    %50 = arith.cmpi slt, %48#5, %49 : vector<1x4xi32>
    %c2147483647_i32_22 = arith.constant 2147483647 : i32
    %51 = vector.broadcast %c2147483647_i32_22 : i32 to vector<1x4xi32>
    %52 = arith.xori %48#5, %51 : vector<1x4xi32>
    %53 = arith.select %50, %52, %48#5 : vector<1x4xi1>, vector<1x4xi32>
    %54 = tpu.bitcast %53 : vector<1x4xi32> -> vector<1x4xf32>
    %c0_i32_23 = arith.constant 0 : i32
    %55 = vector.broadcast %c0_i32_23 : i32 to vector<1x4xi32>
    %56 = arith.cmpi slt, %48#6, %55 : vector<1x4xi32>
    %c2147483647_i32_24 = arith.constant 2147483647 : i32
    %57 = vector.broadcast %c2147483647_i32_24 : i32 to vector<1x4xi32>
    %58 = arith.xori %48#6, %57 : vector<1x4xi32>
    %59 = arith.select %56, %58, %48#6 : vector<1x4xi1>, vector<1x4xi32>
    %60 = tpu.bitcast %59 : vector<1x4xi32> -> vector<1x4xf32>
    %c0_i32_25 = arith.constant 0 : i32
    %61 = vector.broadcast %c0_i32_25 : i32 to vector<1x4xi32>
    %62 = arith.cmpi slt, %48#7, %61 : vector<1x4xi32>
    %c2147483647_i32_26 = arith.constant 2147483647 : i32
    %63 = vector.broadcast %c2147483647_i32_26 : i32 to vector<1x4xi32>
    %64 = arith.xori %48#7, %63 : vector<1x4xi32>
    %65 = arith.select %62, %64, %48#7 : vector<1x4xi1>, vector<1x4xi32>
    %66 = tpu.bitcast %65 : vector<1x4xi32> -> vector<1x4xf32>
    %c0_i32_27 = arith.constant 0 : i32
    %67 = vector.broadcast %c0_i32_27 : i32 to vector<1x4xi32>
    %68 = arith.cmpi slt, %48#8, %67 : vector<1x4xi32>
    %c2147483647_i32_28 = arith.constant 2147483647 : i32
    %69 = vector.broadcast %c2147483647_i32_28 : i32 to vector<1x4xi32>
    %70 = arith.xori %48#8, %69 : vector<1x4xi32>
    %71 = arith.select %68, %70, %48#8 : vector<1x4xi1>, vector<1x4xi32>
    %72 = tpu.bitcast %71 : vector<1x4xi32> -> vector<1x4xf32>
    %c0_i32_29 = arith.constant 0 : i32
    %73 = vector.broadcast %c0_i32_29 : i32 to vector<1x4xi32>
    %74 = arith.cmpi slt, %48#9, %73 : vector<1x4xi32>
    %c2147483647_i32_30 = arith.constant 2147483647 : i32
    %75 = vector.broadcast %c2147483647_i32_30 : i32 to vector<1x4xi32>
    %76 = arith.xori %48#9, %75 : vector<1x4xi32>
    %77 = arith.select %74, %76, %48#9 : vector<1x4xi1>, vector<1x4xi32>
    %78 = tpu.bitcast %77 : vector<1x4xi32> -> vector<1x4xf32>
    %79 = arith.subf %16, %21 : vector<1x4xf32>
    %80 = arith.subf %66, %60 : vector<1x4xf32>
    %81 = arith.mulf %79, %80 : vector<1x4xf32>
    %82 = arith.addf %60, %81 : vector<1x4xf32>
    %83 = arith.subf %20, %22 : vector<1x4xf32>
    %84 = arith.subf %78, %72 : vector<1x4xf32>
    %85 = arith.mulf %83, %84 : vector<1x4xf32>
    %86 = arith.addf %72, %85 : vector<1x4xf32>
    %c0_i32_31 = arith.constant 0 : i32
    %87 = vector.broadcast %c0_i32_31 : i32 to vector<1x4xi32>
    %88 = arith.cmpi eq, %7, %87 : vector<1x4xi32>
    %cst_32 = arith.constant 0x7FC00000 : f32
    %89 = vector.broadcast %cst_32 : f32 to vector<1x4xf32>
    %90 = arith.select %88, %89, %54 : vector<1x4xi1>, vector<1x4xf32>
    %cst_33 = arith.constant 0x7FC00000 : f32
    %91 = vector.broadcast %cst_33 : f32 to vector<1x4xf32>
    %92 = arith.select %88, %91, %82 : vector<1x4xi1>, vector<1x4xf32>
    %cst_34 = arith.constant 0x7FC00000 : f32
    %93 = vector.broadcast %cst_34 : f32 to vector<1x4xf32>
    %94 = arith.select %88, %93, %86 : vector<1x4xi1>, vector<1x4xf32>
    %95 = arith.subf %94, %92 : vector<1x4xf32>
    %96 = vector.broadcast %0 : f32 to vector<1x4xf32>
    %97 = arith.maximumf %95, %96 : vector<1x4xf32>
    %c0_35 = arith.constant 0 : index
    %c0_36 = arith.constant 0 : index
    %c0_37 = arith.constant 0 : index
    %98 = vector.load %arg4[%c0_35, %c0_36, %c0_37] : memref<1x1x4xf32, #tpu.memory_space<vmem>>, vector<1x1x4xf32>
    %99 = vector.shape_cast %98 : vector<1x1x4xf32> to vector<1x4xf32>
    %100 = vector.shape_cast %90 : vector<1x4xf32> to vector<1x1x4xf32>
    tpu.vector_store %arg4[%c0_35, %c0_36, %c0_37], %100 {strides = array<i32>} : memref<1x1x4xf32, #tpu.memory_space<vmem>>, vector<1x1x4xf32>,
    %c0_38 = arith.constant 0 : index
    %c0_39 = arith.constant 0 : index
    %c0_40 = arith.constant 0 : index
    %101 = vector.load %arg5[%c0_38, %c0_39, %c0_40] : memref<1x1x4xf32, #tpu.memory_space<vmem>>, vector<1x1x4xf32>
    %102 = vector.shape_cast %101 : vector<1x1x4xf32> to vector<1x4xf32>
    %103 = vector.shape_cast %97 : vector<1x4xf32> to vector<1x1x4xf32>
    tpu.vector_store %arg5[%c0_38, %c0_39, %c0_40], %103 {strides = array<i32>} : memref<1x1x4xf32, #tpu.memory_space<vmem>>, vector<1x1x4xf32>,
    %cst_41 = arith.constant 1.000000e+00 : f32
    %104 = vector.broadcast %cst_41 : f32 to vector<1x4xf32>
    %105 = arith.divf %104, %97 : vector<1x4xf32>
    %106 = vector.broadcast %90 : vector<1x4xf32> to vector<8x4xf32>
    %107 = arith.subf %2, %106 : vector<8x4xf32>
    %108 = vector.broadcast %105 : vector<1x4xf32> to vector<8x4xf32>
    %109 = arith.mulf %107, %108 : vector<8x4xf32>
    %110 = arith.cmpf one, %109, %109 : vector<8x4xf32>
    %cst_42 = arith.constant 0.000000e+00 : f32
    %111 = vector.broadcast %cst_42 : f32 to vector<8x4xf32>
    %112 = arith.select %110, %111, %109 : vector<8x4xi1>, vector<8x4xf32>
    %c0_43 = arith.constant 0 : index
    %c0_44 = arith.constant 0 : index
    %c0_45 = arith.constant 0 : index
    %113 = vector.load %arg6[%c0_43, %c0_44, %c0_45] : memref<1x8x4xf32, #tpu.memory_space<vmem>>, vector<1x8x4xf32>
    %114 = vector.shape_cast %113 : vector<1x8x4xf32> to vector<8x4xf32>
    %115 = vector.shape_cast %112 : vector<8x4xf32> to vector<1x8x4xf32>
    tpu.vector_store %arg6[%c0_43, %c0_44, %c0_45], %115 {strides = array<i32>} : memref<1x8x4xf32, #tpu.memory_space<vmem>>, vector<1x8x4xf32>,
    return
  }
  func.func @transform_0(%arg0: i32, %arg1: i32) -> i32 {
    %c0_i32 = arith.constant 0 : i32
    %c0_i32_0 = arith.constant 0 : i32
    return %c0_i32 : i32
  }
  func.func @transform_1(%arg0: i32, %arg1: i32) -> (i32, i32, i32) {
    %c0_i32 = arith.constant 0 : i32
    %c0_i32_0 = arith.constant 0 : i32
    return %arg0, %c0_i32, %arg1 : i32, i32, i32
  }
  func.func @transform_2(%arg0: i32, %arg1: i32) -> (i32, i32, i32) {
    %c0_i32 = arith.constant 0 : i32
    %c0_i32_0 = arith.constant 0 : i32
    return %arg0, %c0_i32, %arg1 : i32, i32, i32
  }
  func.func @transform_3(%arg0: i32, %arg1: i32) -> (i32, i32, i32) {
    %c0_i32 = arith.constant 0 : i32
    %c0_i32_0 = arith.constant 0 : i32
    return %arg0, %c0_i32, %arg1 : i32, i32, i32
  }
  func.func @transform_4(%arg0: i32, %arg1: i32) -> (i32, i32, i32) {
    %c0_i32 = arith.constant 0 : i32
    %c0_i32_0 = arith.constant 0 : i32
    return %arg0, %c0_i32, %arg1 : i32, i32, i32
  }
}

</mosaic_0001>

<llo_original>
// kernel: tpu_custom_call.1
$region0: #{tpu_custom_call.1}
  #allocation0 [shape = 'u32[]', space=smem, size = 0x4, offset = 0x4, fixed_abs, tag = 'smem constant byte address 0x4 - core index']
  #allocation1 [shape = 'u32[144,128]{1,0:T(1,128)}', space=vmem, size = 0x12000, scoped, tag = 'internal scratch']
  #allocation2 [shape = 'f32[1]{0:T(128)S(6)}', space=smem, size = 0x200, scoped, tag = 'scoped memory for tpu_custom_call.1']
  %s0 = inlined_call_operand.<no memory space> [shape: f32[1], index: 0, kind: input, shape index: {}]
  %s1 = inlined_call_operand.vmem [shape: f32[2,8,4], index: 1, kind: input, shape index: {}]
  %s2 = inlined_call_operand.hbm [shape: f32[2,1,4], index: 2, kind: output, shape index: {0}]
  %s3 = inlined_call_operand.hbm [shape: f32[2,1,4], index: 3, kind: output, shape index: {1}]
  %s4 = inlined_call_operand.vmem [shape: f32[2,8,4], index: 4, kind: output, shape index: {2}]
  %5 = xla_tuple %s2, %s3, %s4
  %s6 = sld [smem:[#allocation0]]
  $region64: #{tpu_custom_call.1} parent=0
    _
  %s8 = ssub.s32 1, %s6
  %s9 = scalar_select 0, %s8, %s6
  %10 = sst [smem:[#allocation2]] %s0
  $region1: #{tpu_custom_call.1} parent=0
    #allocation3 [shape = 'u8[1024]{0}', space=vmem, size = 0x400, scoped, tag = 'output window, operand 0']
    #allocation4 [shape = 's32[2]{0}', space=sflag, size = 0x8, scoped, tag = 'scoped memory for tpu_custom_call.1']
    #allocation5 [shape = 'u8[1024]{0}', space=vmem, size = 0x400, scoped, tag = 'output window, operand 1']
    #allocation6 [shape = 's32[2]{0}', space=sflag, size = 0x8, scoped, tag = 'scoped memory for tpu_custom_call.1']
    %11 = vsyncpa [#allocation4], 0
    %s12 = scalar_lea.sflag [#allocation4], 1
    %13 = vsyncpa %s12, 0
    %14 = vsyncpa [#allocation6], 0
    %s15 = scalar_lea.sflag [#allocation6], 1
    %16 = vsyncpa %s15, 0
    loop: start=0, step=1, limit=4
    $region2: #{tpu_custom_call.1} parent=1 // loop_pre_header
      _
    $region3: #{tpu_custom_call.1} parent=1 // loop_header
      %s18 = sphi 0, %s22
      %p19 = scmp.ge.s32.totalorder %s18, 4
      %s25 = sphi 0, %s37
      %s26 = sphi 0, %s33
      %s27 = sphi 0, %s25
      %s28 = sphi 0, %s26
      %s29 = sphi 0, %s27
      %s30 = sphi 0, %s28
      %s38 = sphi 0, %s38
      %s40 = sphi 0, %s38
      %s41 = sphi 0, %s40
      %s55 = sphi 0, %s41
      %s63 = sphi 0, %s65
      %s66 = sphi 0, %s63
      %s67 = sphi 0, %s66
      %s83 = sphi 0, %s67
      %s91 = sphi 0, %s93
      %s94 = sphi 0, %s91
      %s95 = sphi 0, %s94
      %s111 = sphi 0, %s95
      %s119 = sphi 0, %s121
      %s122 = sphi 0, %s119
      %s123 = sphi 0, %s122
      %s139 = sphi 0, %s123
      %s147 = sphi 0, %s149
      %s150 = sphi 0, %s147
      %s151 = sphi 0, %s150
      %s167 = sphi 0, %s151
    $region4: #{tpu_custom_call.1} parent=1 // loop_header_branch
      %21 = sbr.rel (%p19) target = $region8
    $region5: #{tpu_custom_call.1} parent=1 // loop_body
      %s23 = ssub.s32 %s18, 1
      %s24 = ssub.s32 %s18, 2
      %s31 = sadd.s32 1, %s26
      %p32 = scmp.ge.s32.totalorder %s31, 1
      %s33 = scalar_select %p32, 0, %s31
      %s34 = sadd.s32 1, %s25
      %s35 = scalar_select %p32, %s34, %s25
      %p36 = scmp.ge.s32.totalorder %s35, 2
      %s37 = scalar_select %p36, 0, %s35
      %s39 = sadd.s32 %s38, 1
      %p42 = scmp.eq.s32.totalorder %s18, 1
      %p43 = scmp.ne.s32.totalorder %s38, %s40
      %p44 = scmp.eq.s32.totalorder %s18, 0
      %p45 = por %p43, %p44
      %p46 = scmp.ne.s32.totalorder %s38, %s40
      %p47 = scmp.eq.s32.totalorder %s23, 1
      %p48 = por %p46, %p47
      %p49 = scmp.ne.s32.totalorder %s40, %s41
      %p50 = scmp.eq.s32.totalorder %s23, 0
      %p51 = por %p49, %p50
      %p52 = scmp.ne.s32.totalorder %s40, %s41
      %p53 = scmp.eq.s32.totalorder %s24, 1
      %p54 = por %p52, %p53
      %p56 = scmp.ne.s32.totalorder %s41, %s55
      %p57 = scmp.eq.s32.totalorder %s24, 0
      %p58 = por %p56, %p57
      %s59 = ssub.s32 %s25, %s37
      %s60 = ssub.s32 %s26, %s33
      %s61 = sor.u32 %s59, %s60
      %p62 = scmp.eq.s32.totalorder %s61, 0
      %s64 = sadd.s32 %s63, 1
      %s65 = scalar_select %p62, %s63, %s64
      %p68 = pneg %p62
      %p69 = scmp.eq.s32.totalorder %s18, 1
      %p70 = por %p68, %p69
      %p71 = scmp.ne.s32.totalorder %s63, %s66
      %p72 = scmp.eq.s32.totalorder %s18, 0
      %p73 = por %p71, %p72
      %p74 = scmp.ne.s32.totalorder %s63, %s66
      %p75 = scmp.eq.s32.totalorder %s23, 1
      %p76 = por %p74, %p75
      %p77 = scmp.ne.s32.totalorder %s66, %s67
      %p78 = scmp.eq.s32.totalorder %s23, 0
      %p79 = por %p77, %p78
      %p80 = scmp.ne.s32.totalorder %s66, %s67
      %p81 = scmp.eq.s32.totalorder %s24, 1
      %p82 = por %p80, %p81
      %p84 = scmp.ne.s32.totalorder %s67, %s83
      %p85 = scmp.eq.s32.totalorder %s24, 0
      %p86 = por %p84, %p85
      %s87 = ssub.s32 %s25, %s37
      %s88 = ssub.s32 %s26, %s33
      %s89 = sor.u32 %s87, %s88
      %p90 = scmp.eq.s32.totalorder %s89, 0
      %s92 = sadd.s32 %s91, 1
      %s93 = scalar_select %p90, %s91, %s92
      %p96 = pneg %p90
      %p97 = scmp.eq.s32.totalorder %s18, 1
      %p98 = por %p96, %p97
      %p99 = scmp.ne.s32.totalorder %s91, %s94
      %p100 = scmp.eq.s32.totalorder %s18, 0
      %p101 = por %p99, %p100
      %p102 = scmp.ne.s32.totalorder %s91, %s94
      %p103 = scmp.eq.s32.totalorder %s23, 1
      %p104 = por %p102, %p103
      %p105 = scmp.ne.s32.totalorder %s94, %s95
      %p106 = scmp.eq.s32.totalorder %s23, 0
      %p107 = por %p105, %p106
      %p108 = scmp.ne.s32.totalorder %s94, %s95
      %p109 = scmp.eq.s32.totalorder %s24, 1
      %p110 = por %p108, %p109
      %p112 = scmp.ne.s32.totalorder %s95, %s111
      %p113 = scmp.eq.s32.totalorder %s24, 0
      %p114 = por %p112, %p113
      %s115 = ssub.s32 %s25, %s37
      %s116 = ssub.s32 %s26, %s33
      %s117 = sor.u32 %s115, %s116
      %p118 = scmp.eq.s32.totalorder %s117, 0
      %s120 = sadd.s32 %s119, 1
      %s121 = scalar_select %p118, %s119, %s120
      %p124 = pneg %p118
      %p125 = scmp.eq.s32.totalorder %s18, 1
      %p126 = por %p124, %p125
      %p127 = scmp.ne.s32.totalorder %s119, %s122
      %p128 = scmp.eq.s32.totalorder %s18, 0
      %p129 = por %p127, %p128
      %p130 = scmp.ne.s32.totalorder %s119, %s122
      %p131 = scmp.eq.s32.totalorder %s23, 1
      %p132 = por %p130, %p131
      %p133 = scmp.ne.s32.totalorder %s122, %s123
      %p134 = scmp.eq.s32.totalorder %s23, 0
      %p135 = por %p133, %p134
      %p136 = scmp.ne.s32.totalorder %s122, %s123
      %p137 = scmp.eq.s32.totalorder %s24, 1
      %p138 = por %p136, %p137
      %p140 = scmp.ne.s32.totalorder %s123, %s139
      %p141 = scmp.eq.s32.totalorder %s24, 0
      %p142 = por %p140, %p141
      %s143 = ssub.s32 %s25, %s37
      %s144 = ssub.s32 %s26, %s33
      %s145 = sor.u32 %s143, %s144
      %p146 = scmp.eq.s32.totalorder %s145, 0
      %s148 = sadd.s32 %s147, 1
      %s149 = scalar_select %p146, %s147, %s148
      %p152 = pneg %p146
      %p153 = scmp.eq.s32.totalorder %s18, 1
      %p154 = por %p152, %p153
      %p155 = scmp.ne.s32.totalorder %s147, %s150
      %p156 = scmp.eq.s32.totalorder %s18, 0
      %p157 = por %p155, %p156
      %p158 = scmp.ne.s32.totalorder %s147, %s150
      %p159 = scmp.eq.s32.totalorder %s23, 1
      %p160 = por %p158, %p159
      %p161 = scmp.ne.s32.totalorder %s150, %s151
      %p162 = scmp.eq.s32.totalorder %s23, 0
      %p163 = por %p161, %p162
      %p164 = scmp.ne.s32.totalorder %s150, %s151
      %p165 = scmp.eq.s32.totalorder %s24, 1
      %p166 = por %p164, %p165
      %p168 = scmp.ne.s32.totalorder %s151, %s167
      %p169 = scmp.eq.s32.totalorder %s24, 0
      %p170 = por %p168, %p169
      %p171 = scmp.le.s32.totalorder 1, %s18
      %p172 = scmp.lt.s32.totalorder %s18, 3
      %p173 = pnand %p171, %p172
      %p174 = pneg %p173
      // Predicated region
      $region9: #{tpu_custom_call.1} parent=5 // pred_check
        _
      $region10: #{tpu_custom_call.1} parent=5 // pred_check_branch
        %176 = sbr.rel (%p173) target = $region12
      $region11: #{tpu_custom_call.1} parent=5 // pred_region
        %s177 = ssub.s32 %s18, 1
        // Predicated region
        $region13: #{tpu_custom_call.1} parent=11 // pred_check
          %p178 = pneg %p51
        $region14: #{tpu_custom_call.1} parent=11 // pred_check_branch
          %180 = sbr.rel (%p178) target = $region16
        $region15: #{tpu_custom_call.1} parent=11 // pred_region
          _
        $region16: #{tpu_custom_call.1} parent=11 // pred_fallthru
          _
      $region12: #{tpu_custom_call.1} parent=5 // pred_fallthru
        _
      %p181 = scmp.lt.s32.totalorder %s18, 2
      // Predicated region
      $region17: #{tpu_custom_call.1} parent=5 // pred_check
        %p182 = pneg %p181
      $region18: #{tpu_custom_call.1} parent=5 // pred_check_branch
        %184 = sbr.rel (%p182) target = $region20
      $region19: #{tpu_custom_call.1} parent=5 // pred_region
        // Predicated region
        $region21: #{tpu_custom_call.1} parent=19 // pred_check
          %p185 = pneg %p73
        $region22: #{tpu_custom_call.1} parent=19 // pred_check_branch
          %187 = sbr.rel (%p185) target = $region24
        $region23: #{tpu_custom_call.1} parent=19 // pred_region
          %p188 = scmp.lt.s32.totalorder %s25, 1
          %s189 = scalar_select %p188, %s25, 1
          %p190 = scmp.lt.s32.totalorder %s26, 0
          %s191 = scalar_select %p190, %s26, 0
          %s192 = sadd.s32 %s191, %s189
          %s193 = smul.addr %s192, 8
          %s194 = scalar_lea.vmem %s1, %s193
        $region24: #{tpu_custom_call.1} parent=19 // pred_fallthru
          _
      $region20: #{tpu_custom_call.1} parent=5 // pred_fallthru
        _
      %p195 = scmp.le.s32.totalorder 1, %s18
      %p196 = scmp.lt.s32.totalorder %s18, 3
      %p197 = pnand %p195, %p196
      %p198 = pneg %p197
      // Predicated region
      $region25: #{tpu_custom_call.1} parent=5 // pred_check
        _
      $region26: #{tpu_custom_call.1} parent=5 // pred_check_branch
        %200 = sbr.rel (%p197) target = $region28
      $region27: #{tpu_custom_call.1} parent=5 // pred_region
        %s201 = ssub.s32 %s18, 1
        %p202 = pneg %p51
        %p203 = pneg %p48
        %p204 = scmp.lt.s32.totalorder %s27, 1
        %s205 = scalar_select %p204, %s27, 1
        %p206 = scmp.lt.s32.totalorder %s28, 0
        %s207 = scalar_select %p206, %s28, 0
        %s208 = sadd.s32 %s207, %s205
        %s209 = smul.addr %s208, 8
        %s210 = scalar_lea.vmem %s1, %s209
        %p211 = pneg %p79
        %p212 = pneg %p76
        %p213 = pneg %p107
        %p214 = pneg %p104
        %s215 = sand.u32 %s94, 1
        %s216 = scalar_lea.sflag [#allocation4], %s215
        %s217 = sand.u32 %s94, 1
        %s218 = scalar_lea.vmem [#allocation3], %s217
        %p219 = pneg %p135
        %p220 = pneg %p132
        %s221 = sand.u32 %s122, 1
        %s222 = scalar_lea.sflag [#allocation6], %s221
        %s223 = sand.u32 %s122, 1
        %s224 = scalar_lea.vmem [#allocation5], %s223
        %p225 = pneg %p163
        %p226 = pneg %p160
        %p227 = scmp.lt.s32.totalorder %s27, 1
        %s228 = scalar_select %p227, %s27, 1
        %p229 = scmp.lt.s32.totalorder %s28, 0
        %s230 = scalar_select %p229, %s28, 0
        %s231 = sadd.s32 %s230, %s228
        %s232 = smul.addr %s231, 8
        %s233 = scalar_lea.vmem %s4, %s232
        %p234 = scmp.lt.s32.totalorder %s27, 1
        %s235 = scalar_select %p234, %s27, 1
        %p236 = scmp.lt.s32.totalorder %s28, 0
        %s237 = scalar_select %p236, %s28, 0
        %s238 = sadd.s32 %s237, %s235
        %s239 = smul.addr %s238, 8
        %s240 = scalar_lea.vmem %s1, %s239
        %p241 = scmp.lt.s32.totalorder %s27, 1
        %s242 = scalar_select %p241, %s27, 1
        %p243 = scmp.lt.s32.totalorder %s28, 0
        %s244 = scalar_select %p243, %s28, 0
        %s245 = sadd.s32 %s244, %s242
        %s246 = smul.addr %s245, 8
        %s247 = scalar_lea.vmem %s4, %s246
        %s248 = sld [smem:[#allocation2]]
        %v249 = vld [vmem:[%s240] sm:$0xff]
        %vm250 = vcmp.ne.f32.partialorder %v249, %v249
        %vm251 = vmxor %vm250, 1
        %v252 = vsel %vm251, 1, 0
        %vm253 = vcmask 31744
        %v254 = vsel %vm253, %v252, 0
        %v255 = vrot.slane %v254, 4
        %v256 = vadd.s32 %v254, %v255
        %v257 = vrot.slane %v256, 2
        %v258 = vadd.s32 %v256, %v257
        %v259 = vrot.slane %v258, 1
        %v260 = vadd.s32 %v258, %v259
        %v261 = vcvt.s32.f32 %v260
        %v262 = vsub.s32 %v260, 1
        %v263 = vshra.s32 %v262, 1
        %v264 = vsub.f32 %v261, 1.0
        %v265 = vmul.f32 %v264, 0.25
        %v266 = vmul.f32 %v264, 0.75
        %v267 = vfloor.f32 %v265
        %v268 = vfloor.f32 %v266
        %v269 = vcvt.f32.s32.to.zero.pseudo %v267
        %v270 = vceil.f32 %v265
        %v271 = vcvt.f32.s32.to.zero.pseudo %v270
        %v272 = vcvt.f32.s32.to.zero.pseudo %v268
        %v273 = vceil.f32 %v266
        %v274 = vcvt.f32.s32.to.zero.pseudo %v273
        %vm276 = vcmp.lt.s32.totalorder %v249, 0
        %v277 = vxor.u32 %v249, 2147483647
        %v278 = vsel %vm276, %v277, %v249
        %v279 = vsel %vm250, 2147483647, %v278
        loop: start=0, step=1, limit=32
        $region29: #{tpu_custom_call.1} parent=27 // loop_pre_header
          _
        $region30: #{tpu_custom_call.1} parent=27 // loop_header
          %s281 = sphi 0, %s285
          %p282 = scmp.ge.s32.totalorder %s281, 32
          %v286 = vphi 2147483648, %v313
          %v287 = vphi 2147483648, %v332
          %v288 = vphi 2147483648, %v351
          %v289 = vphi 2147483648, %v370
          %v290 = vphi 2147483648, %v389
          %v291 = vphi 2147483647, %v314
          %v292 = vphi 2147483647, %v333
          %v293 = vphi 2147483647, %v352
          %v294 = vphi 2147483647, %v371
          %v295 = vphi 2147483647, %v390
        $region31: #{tpu_custom_call.1} parent=27 // loop_header_branch
          %284 = sbr.rel (%p282) target = $region35
        $region32: #{tpu_custom_call.1} parent=27 // loop_body
          %v296 = vshra.s32 %v286, 1
          %v297 = vshra.s32 %v291, 1
          %v298 = vadd.s32 %v296, %v297
          %v299 = vand.u32 %v286, %v291
          %v300 = vand.u32 %v299, 1
          %v301 = vadd.s32 %v298, %v300
          %vm302 = vcmp.le.s32.totalorder %v279, %v301
          %v303 = vsel %vm302, 1, 0
          %v304 = vsel %vm253, %v303, 0
          %v305 = vrot.slane %v304, 4
          %v306 = vadd.s32 %v304, %v305
          %v307 = vrot.slane %v306, 2
          %v308 = vadd.s32 %v306, %v307
          %v309 = vrot.slane %v308, 1
          %v310 = vadd.s32 %v308, %v309
          %vm311 = vcmp.gt.s32.totalorder %v310, %v263
          %v312 = vadd.s32 %v301, 1
          %v313 = vsel %vm311, %v286, %v312
          %v314 = vsel %vm311, %v301, %v291
          %v315 = vshra.s32 %v287, 1
          %v316 = vshra.s32 %v292, 1
          %v317 = vadd.s32 %v315, %v316
          %v318 = vand.u32 %v287, %v292
          %v319 = vand.u32 %v318, 1
          %v320 = vadd.s32 %v317, %v319
          %vm321 = vcmp.le.s32.totalorder %v279, %v320
          %v322 = vsel %vm321, 1, 0
          %v323 = vsel %vm253, %v322, 0
          %v324 = vrot.slane %v323, 4
          %v325 = vadd.s32 %v323, %v324
          %v326 = vrot.slane %v325, 2
          %v327 = vadd.s32 %v325, %v326
          %v328 = vrot.slane %v327, 1
          %v329 = vadd.s32 %v327, %v328
          %vm330 = vcmp.gt.s32.totalorder %v329, %v269
          %v331 = vadd.s32 %v320, 1
          %v332 = vsel %vm330, %v287, %v331
          %v333 = vsel %vm330, %v320, %v292
          %v334 = vshra.s32 %v288, 1
          %v335 = vshra.s32 %v293, 1
          %v336 = vadd.s32 %v334, %v335
          %v337 = vand.u32 %v288, %v293
          %v338 = vand.u32 %v337, 1
          %v339 = vadd.s32 %v336, %v338
          %vm340 = vcmp.le.s32.totalorder %v279, %v339
          %v341 = vsel %vm340, 1, 0
          %v342 = vsel %vm253, %v341, 0
          %v343 = vrot.slane %v342, 4
          %v344 = vadd.s32 %v342, %v343
          %v345 = vrot.slane %v344, 2
          %v346 = vadd.s32 %v344, %v345
          %v347 = vrot.slane %v346, 1
          %v348 = vadd.s32 %v346, %v347
          %vm349 = vcmp.gt.s32.totalorder %v348, %v271
          %v350 = vadd.s32 %v339, 1
          %v351 = vsel %vm349, %v288, %v350
          %v352 = vsel %vm349, %v339, %v293
          %v353 = vshra.s32 %v289, 1
          %v354 = vshra.s32 %v294, 1
          %v355 = vadd.s32 %v353, %v354
          %v356 = vand.u32 %v289, %v294
          %v357 = vand.u32 %v356, 1
          %v358 = vadd.s32 %v355, %v357
          %vm359 = vcmp.le.s32.totalorder %v279, %v358
          %v360 = vsel %vm359, 1, 0
          %v361 = vsel %vm253, %v360, 0
          %v362 = vrot.slane %v361, 4
          %v363 = vadd.s32 %v361, %v362
          %v364 = vrot.slane %v363, 2
          %v365 = vadd.s32 %v363, %v364
          %v366 = vrot.slane %v365, 1
          %v367 = vadd.s32 %v365, %v366
          %vm368 = vcmp.gt.s32.totalorder %v367, %v272
          %v369 = vadd.s32 %v358, 1
          %v370 = vsel %vm368, %v289, %v369
          %v371 = vsel %vm368, %v358, %v294
          %v372 = vshra.s32 %v290, 1
          %v373 = vshra.s32 %v295, 1
          %v374 = vadd.s32 %v372, %v373
          %v375 = vand.u32 %v290, %v295
          %v376 = vand.u32 %v375, 1
          %v377 = vadd.s32 %v374, %v376
          %vm378 = vcmp.le.s32.totalorder %v279, %v377
          %v379 = vsel %vm378, 1, 0
          %v380 = vsel %vm253, %v379, 0
          %v381 = vrot.slane %v380, 4
          %v382 = vadd.s32 %v380, %v381
          %v383 = vrot.slane %v382, 2
          %v384 = vadd.s32 %v382, %v383
          %v385 = vrot.slane %v384, 1
          %v386 = vadd.s32 %v384, %v385
          %vm387 = vcmp.gt.s32.totalorder %v386, %v274
          %v388 = vadd.s32 %v377, 1
          %v389 = vsel %vm387, %v290, %v388
          %v390 = vsel %vm387, %v377, %v295
        $region33: #{tpu_custom_call.1} parent=27 // loop_footer
          %s285 = sadd.s32 1, %s281
        $region34: #{tpu_custom_call.1} parent=27 // loop_footer_branch
          %280 = sbr.rel target = $region30
        $region35: #{tpu_custom_call.1} parent=27 // loop_exit
          _
        %vm391 = vcmp.lt.s32.totalorder %v291, 0
        %v392 = vxor.u32 %v291, 2147483647
        %v393 = vsel %vm391, %v392, %v291
        %vm395 = vcmp.lt.s32.totalorder %v292, 0
        %v396 = vxor.u32 %v292, 2147483647
        %v397 = vsel %vm395, %v396, %v292
        %vm399 = vcmp.lt.s32.totalorder %v293, 0
        %v400 = vxor.u32 %v293, 2147483647
        %v401 = vsel %vm399, %v400, %v293
        %vm403 = vcmp.lt.s32.totalorder %v294, 0
        %v404 = vxor.u32 %v294, 2147483647
        %v405 = vsel %vm403, %v404, %v294
        %vm407 = vcmp.lt.s32.totalorder %v295, 0
        %v408 = vxor.u32 %v295, 2147483647
        %v409 = vsel %vm407, %v408, %v295
        %v411 = vsub.f32 %v265, %v267
        %v412 = vsub.f32 %v401, %v397
        %v413 = vmul.f32 %v411, %v412
        %v414 = vadd.f32 %v397, %v413
        %v415 = vsub.f32 %v266, %v268
        %v416 = vsub.f32 %v409, %v405
        %v417 = vmul.f32 %v415, %v416
        %v418 = vadd.f32 %v405, %v417
        %vm419 = vcmp.eq.s32.totalorder %v260, 0
        %v420 = vsel %vm419, nan, %v393
        %v421 = vsel %vm419, nan, %v414
        %v422 = vsel %vm419, nan, %v418
        %v423 = vsub.f32 %v422, %v421
        %v424 = vstv %s248
        %v425 = vmax.f32 %v423, %v424
        %vm426 = vcmask 24576
        %427 = vst.msk [vmem:[%s218] sm:$0x1] %vm426, %v420
        %428 = vst.msk [vmem:[%s224] sm:$0x1] %vm426, %v425
        %v429 = vrcp.pop %v425
        %v430 = vmul.f32 1.0, %v429
        %v431 = vsub.f32 %v249, %v420
        %v432 = vmul.f32 %v431, %v430
        %vm433 = vcmp.ne.f32.partialorder %v432, %v432
        %v434 = vsel %vm433, 0.0, %v432
        %435 = vst.msk [vmem:[%s247] sm:$0xff] %vm253, %v434
        %s436 = sand.u32 %s94, 1
        %s437 = scalar_lea.sflag [#allocation4], %s436
        %s438 = sand.u32 %s94, 1
        %s439 = scalar_lea.vmem [#allocation3], %s438
        %s440 = sand.u32 %s122, 1
        %s441 = scalar_lea.sflag [#allocation6], %s440
        %s442 = sand.u32 %s122, 1
        %s443 = scalar_lea.vmem [#allocation5], %s442
        %p444 = scmp.lt.s32.totalorder %s27, 1
        %s445 = scalar_select %p444, %s27, 1
        %p446 = scmp.lt.s32.totalorder %s28, 0
        %s447 = scalar_select %p446, %s28, 0
        %s448 = sadd.s32 %s447, %s445
        %s449 = smul.addr %s448, 8
        %s450 = scalar_lea.vmem %s4, %s449
        // Predicated region
        $region36: #{tpu_custom_call.1} parent=27 // pred_check
          %p451 = pneg %p104
        $region37: #{tpu_custom_call.1} parent=27 // pred_check_branch
          %453 = sbr.rel (%p451) target = $region39
        $region38: #{tpu_custom_call.1} parent=27 // pred_region
          %s455 = ssub.s32 16, 16
          %456 = vsyncadd %s437, %s455
          %s457 = sadd.s32 %s28, %s27
          %s458 = smul.addr %s457, 16
          %s459 = scalar_lea.hbm %s2, %s458
          %s461 = sshll.u32 %s439, 4
          %s462 = int_to_ptr.vmem [resolvable:$true] %s461
          %464 = dma.vmem_to_hbm [thread:$0]  %s462, 16, %s459, %s437
        $region39: #{tpu_custom_call.1} parent=27 // pred_fallthru
          _
        // Predicated region
        $region40: #{tpu_custom_call.1} parent=27 // pred_check
          %p465 = pneg %p132
        $region41: #{tpu_custom_call.1} parent=27 // pred_check_branch
          %467 = sbr.rel (%p465) target = $region43
        $region42: #{tpu_custom_call.1} parent=27 // pred_region
          %s469 = ssub.s32 16, 16
          %470 = vsyncadd %s441, %s469
          %s471 = sadd.s32 %s28, %s27
          %s472 = smul.addr %s471, 16
          %s473 = scalar_lea.hbm %s3, %s472
          %s475 = sshll.u32 %s443, 4
          %s476 = int_to_ptr.vmem [resolvable:$true] %s475
          %478 = dma.vmem_to_hbm [thread:$0]  %s476, 16, %s473, %s441
        $region43: #{tpu_custom_call.1} parent=27 // pred_fallthru
          _
        // Predicated region
        $region44: #{tpu_custom_call.1} parent=27 // pred_check
          %p479 = pneg %p160
        $region45: #{tpu_custom_call.1} parent=27 // pred_check_branch
          %481 = sbr.rel (%p479) target = $region47
        $region46: #{tpu_custom_call.1} parent=27 // pred_region
          _
        $region47: #{tpu_custom_call.1} parent=27 // pred_fallthru
          _
      $region28: #{tpu_custom_call.1} parent=5 // pred_fallthru
        _
      %p482 = scmp.le.s32.totalorder 2, %s18
      // Predicated region
      $region48: #{tpu_custom_call.1} parent=5 // pred_check
        %p483 = pneg %p482
      $region49: #{tpu_custom_call.1} parent=5 // pred_check_branch
        %485 = sbr.rel (%p483) target = $region51
      $region50: #{tpu_custom_call.1} parent=5 // pred_region
        %s486 = ssub.s32 %s18, 2
        // Predicated region
        $region52: #{tpu_custom_call.1} parent=50 // pred_check
          %p487 = pneg %p110
        $region53: #{tpu_custom_call.1} parent=50 // pred_check_branch
          %489 = sbr.rel (%p487) target = $region55
        $region54: #{tpu_custom_call.1} parent=50 // pred_region
          %s490 = sand.u32 %s95, 1
          %s491 = scalar_lea.sflag [#allocation4], %s490
          %s492 = sand.u32 %s95, 1
          %s493 = scalar_lea.vmem [#allocation3], %s492
          %494 = dma.done %s491, 16
        $region55: #{tpu_custom_call.1} parent=50 // pred_fallthru
          _
        // Predicated region
        $region56: #{tpu_custom_call.1} parent=50 // pred_check
          %p495 = pneg %p138
        $region57: #{tpu_custom_call.1} parent=50 // pred_check_branch
          %497 = sbr.rel (%p495) target = $region59
        $region58: #{tpu_custom_call.1} parent=50 // pred_region
          %s498 = sand.u32 %s123, 1
          %s499 = scalar_lea.sflag [#allocation6], %s498
          %s500 = sand.u32 %s123, 1
          %s501 = scalar_lea.vmem [#allocation5], %s500
          %502 = dma.done %s499, 16
        $region59: #{tpu_custom_call.1} parent=50 // pred_fallthru
          _
        // Predicated region
        $region60: #{tpu_custom_call.1} parent=50 // pred_check
          %p503 = pneg %p166
        $region61: #{tpu_custom_call.1} parent=50 // pred_check_branch
          %505 = sbr.rel (%p503) target = $region63
        $region62: #{tpu_custom_call.1} parent=50 // pred_region
          %p506 = scmp.lt.s32.totalorder %s29, 1
          %s507 = scalar_select %p506, %s29, 1
          %p508 = scmp.lt.s32.totalorder %s30, 0
          %s509 = scalar_select %p508, %s30, 0
          %s510 = sadd.s32 %s509, %s507
          %s511 = smul.addr %s510, 8
          %s512 = scalar_lea.vmem %s4, %s511
        $region63: #{tpu_custom_call.1} parent=50 // pred_fallthru
          _
      $region51: #{tpu_custom_call.1} parent=5 // pred_fallthru
        _
    $region6: #{tpu_custom_call.1} parent=1 // loop_footer
      %s22 = sadd.s32 1, %s18
    $region7: #{tpu_custom_call.1} parent=1 // loop_footer_branch
      %17 = sbr.rel target = $region3
    $region8: #{tpu_custom_call.1} parent=1 // loop_exit
      _
    %513 = vsyncpa [#allocation4], 1
    %s514 = scalar_lea.sflag [#allocation4], 1
    %515 = vsyncpa %s514, 1
    %516 = vsyncpa [#allocation6], 1
    %s517 = scalar_lea.sflag [#allocation6], 1
    %518 = vsyncpa %s517, 1

</llo_original>
